<compile_context>
chip_gen: v5e
topology: v5e:2x2
jax: 0.10.0
libtpu: 0.0.40
codegen_flags: <defaults>
</compile_context>

<pallas_src>
import functools

import jax
import jax.numpy as jnp
from jax.experimental import pallas as pl
from jax.experimental.pallas import tpu as pltpu


# ---------------------------------------------------------------------------
# Helpers
# ---------------------------------------------------------------------------
_MAX_TILE_B = 8192            # lane-axis tile upper bound (multiple of 128)
_LANE = 128
_STREAM_DTYPE = jnp.bfloat16  # streamed operand dtype (f32 accumulation)


def _round_up(x, m):
    return ((x + m - 1) // m) * m


def _cdiv(a, b):
    return -(-a // b)


def _vmem_capacity_bytes():
    try:
        cap = getattr(pltpu.get_tpu_info(), "vmem_capacity_bytes", None)
        if cap:
            return int(cap)
    except Exception:
        pass
    return 64 * 1024 * 1024   # conservative default: v7x per-core VMEM


@functools.lru_cache(maxsize=None)
def _vmem_limit_bytes():
    # ~48 MiB scoped limit on v7x (64 MiB physical), ~96 MiB on v5e/v6e.
    return int(_vmem_capacity_bytes() * 3 // 4)


def _choose_tile(bp, bytes_per_batch_elem):
    """Lane-axis (batch) tile: multiple of 128, as big as the double-buffered
    VMEM budget allows, and capped so the grid has >= 2 steps when there is
    enough batch (keeps both v7x TensorCores busy, enables DMA overlap)."""
    budget = int(_vmem_limit_bytes() * 0.8)                 # headroom
    tb_vmem = budget // max(2 * bytes_per_batch_elem, 1)    # 2 = double buffer
    tb = min(_MAX_TILE_B, bp, tb_vmem)
    tb = max(_LANE, (tb // _LANE) * _LANE)
    if bp >= 2 * _LANE and tb >= bp:
        tb = _round_up(_cdiv(bp, 2), _LANE)                 # force >= 2 steps
    return tb


def _pad_lanes(x, target):
    pad = target - x.shape[-1]
    if pad == 0:
        return x
    return jnp.pad(x, ((0, 0), (0, pad)))


def _compiler_params():
    return pltpu.CompilerParams(
        dimension_semantics=("parallel",),      # batch tiles are independent
        vmem_limit_bytes=_vmem_limit_bytes(),
    )


# ---------------------------------------------------------------------------
# Kernels (all big operands arrive transposed: [feature, batch_tile])
# ---------------------------------------------------------------------------
def _warm_kernel(u_ref, i_ref, y_ref):
    # u_ref, i_ref: [E, TB] bf16 (lane-dense); y_ref: [1, TB] f32.
    u = u_ref[...].astype(jnp.float32)          # upcast in-register (v5e VPU)
    i = i_ref[...].astype(jnp.float32)
    y_ref[...] = jnp.sum(u * i, axis=0, keepdims=True)


def _cold_a_kernel(c_ref, w_ref, b_ref, u_ref, meta_ref, y_ref):
    # c_ref: [C, TB] bf16 content tile
    # w_ref: [E, C]  bf16 Linear weight, pre-scaled by 1/5 (VMEM-resident)
    # b_ref: [E, 1]  f32  Linear bias,   pre-scaled by 1/5 (VMEM-resident)
    # meta_T = W @ content_T + b  ==  ((content @ W^T + b) / 5)^T
    meta_t = (
        jnp.dot(w_ref[...], c_ref[...], preferred_element_type=jnp.float32)
        + b_ref[...]
    )
    meta_ref[...] = meta_t.astype(meta_ref.dtype)
    # cold_yhat_a = sum(user_emb * meta_ID_emb, dim=E)
    y_ref[...] = jnp.sum(u_ref[...].astype(jnp.float32) * meta_t,
                         axis=0, keepdims=True)


def _cold_b_kernel(lr_ref, u_ref, meta_ref, g_ref, y_ref):
    # lr_ref: (1, 1) scalar in SMEM; meta/grad f32, user bf16.
    lr = lr_ref[0, 0]
    meta_new = meta_ref[...] - lr * g_ref[...]          # meta - cold_lr * grad
    y_ref[...] = jnp.sum(u_ref[...].astype(jnp.float32) * meta_new,
                         axis=0, keepdims=True)


# ---------------------------------------------------------------------------
# Pallas-backed wrappers (transposed [feature, B] convention)
# ---------------------------------------------------------------------------
def warm_yhat_t(user_embs_t, item_embs_t):
    """y_hat = sum(user_emb * item_emb, feature axis). Inputs [E, B]."""
    E, B = user_embs_t.shape
    bp = _round_up(B, _LANE)
    u_t = _pad_lanes(user_embs_t, bp)
    i_t = _pad_lanes(item_embs_t, bp)
    bytes_per = E * (u_t.dtype.itemsize + i_t.dtype.itemsize) + 4
    tb = _choose_tile(bp, bytes_per)

    y = pl.pallas_call(
        _warm_kernel,
        grid=(_cdiv(bp, tb),),
        in_specs=[
            pl.BlockSpec((E, tb), lambda i: (0, i)),
            pl.BlockSpec((E, tb), lambda i: (0, i)),
        ],
        out_specs=pl.BlockSpec((1, tb), lambda i: (0, i)),
        out_shape=jax.ShapeDtypeStruct((1, bp), jnp.float32),
        compiler_params=_compiler_params(),
    )(u_t, i_t)
    return y[0, :B]


def cold_a_yhat_t(contents_t, w_scaled, b_scaled, user_embs_t):
    """meta = (content @ W^T + b)/5 (folded into W,b); y = sum(user*meta).

    contents_t: [C, B], user_embs_t: [E, B].  Returns (meta_t [E, Bp], y [B]).
    meta stays in the transposed, padded layout for cold(b).
    """
    C, B = contents_t.shape
    E = user_embs_t.shape[0]
    bp = _round_up(B, _LANE)
    c_t = _pad_lanes(contents_t, bp)
    u_t = _pad_lanes(user_embs_t, bp)
    bytes_per = (C * c_t.dtype.itemsize + E * u_t.dtype.itemsize + E * 4 + 4)
    tb = _choose_tile(bp, bytes_per)

    meta_t, y = pl.pallas_call(
        _cold_a_kernel,
        grid=(_cdiv(bp, tb),),
        in_specs=[
            pl.BlockSpec((C, tb), lambda i: (0, i)),          # content tile
            pl.BlockSpec((E, C), lambda i: (0, 0)),           # weight, resident
            pl.BlockSpec((E, 1), lambda i: (0, 0)),           # bias, resident
            pl.BlockSpec((E, tb), lambda i: (0, i)),          # user tile
        ],
        out_specs=(
            pl.BlockSpec((E, tb), lambda i: (0, i)),          # meta^T tile
            pl.BlockSpec((1, tb), lambda i: (0, i)),          # y tile
        ),
        out_shape=(
            jax.ShapeDtypeStruct((E, bp), jnp.float32),
            jax.ShapeDtypeStruct((1, bp), jnp.float32),
        ),
        compiler_params=_compiler_params(),
    )(c_t, w_scaled, b_scaled, u_t)
    return meta_t, y[0, :B]


def cold_b_yhat_t(user_embs_t, meta_emb_t, grads_t, cold_lr):
    """meta_new = meta - cold_lr*grad; y = sum(user * meta_new). Inputs [*, B]."""
    E, B = user_embs_t.shape
    bp = _round_up(B, _LANE)
    u_t = _pad_lanes(user_embs_t, bp)
    m_t = _pad_lanes(meta_emb_t, bp)
    g_t = _pad_lanes(grads_t, bp)
    bytes_per = E * (u_t.dtype.itemsize + m_t.dtype.itemsize
                     + g_t.dtype.itemsize) + 4
    tb = _choose_tile(bp, bytes_per)
    lr_arr = jnp.full((1, 1), cold_lr, dtype=jnp.float32)   # SMEM scalar

    y = pl.pallas_call(
        _cold_b_kernel,
        grid=(_cdiv(bp, tb),),
        in_specs=[
            pl.BlockSpec(memory_space=pltpu.MemorySpace.SMEM),   # cold_lr
            pl.BlockSpec((E, tb), lambda i: (0, i)),
            pl.BlockSpec((E, tb), lambda i: (0, i)),
            pl.BlockSpec((E, tb), lambda i: (0, i)),
        ],
        out_specs=pl.BlockSpec((1, tb), lambda i: (0, i)),
        out_shape=jax.ShapeDtypeStruct((1, bp), jnp.float32),
        compiler_params=_compiler_params(),
    )(lr_arr, u_t, m_t, g_t)
    return y[0, :B]


# ---------------------------------------------------------------------------
# Module equivalent (cold_object='item' path; the 'user' path is the same
# kernels with user/item roles swapped)
# ---------------------------------------------------------------------------
class MetaEmbeddingLearner:
    """JAX/Pallas equivalent of MetaEmbedding_Learner.

    Tables are stored pre-transposed ([feature, rows]) and pre-cast to bf16 so
    one gather yields the kernel-ready lane-dense layout; meta_ID_emb is kept
    transposed ([E, Bp], f32) between the cold phases.
    """

    def __init__(self, user_emb, item_emb, item_content, weight, bias, cold_lr):
        self.user_emb_t = jnp.asarray(user_emb, jnp.float32).T.astype(_STREAM_DTYPE)
        self.item_emb_t = jnp.asarray(item_emb, jnp.float32).T.astype(_STREAM_DTYPE)
        self.item_content_t = jnp.asarray(item_content, jnp.float32).T.astype(_STREAM_DTYPE)
        # nn.Linear(content_dim, emb_size): weight [E, C], bias [E].
        # Fold generate_meta_emb's /5.0 into the params once; weight in bf16
        # for an MXU-native matmul (accumulation stays f32 in-kernel).
        self.w_scaled = (jnp.asarray(weight, jnp.float32) / 5.0).astype(_STREAM_DTYPE)
        self.b_scaled = (jnp.asarray(bias, jnp.float32) / 5.0).reshape(-1, 1)
        self.cold_lr = float(cold_lr)
        self.emb_size = self.user_emb_t.shape[0]
        self.meta_ID_emb_t = None           # [E, Bp] transposed, padded

    def get_embeddings_and_info(self, batch_u, batch_i):
        # Pad the *indices* (cheap, int32) so the gather directly produces
        # 128-lane-aligned [feat, Bp] arrays -- no pad pass over the data.
        # TODO(synk): fuse this gather into the kernels (scalar prefetch).
        b = batch_u.shape[0]
        bp = _round_up(b, _LANE)
        u_idx = jnp.pad(batch_u.astype(jnp.int32), (0, bp - b))
        i_idx = jnp.pad(batch_i.astype(jnp.int32), (0, bp - b))
        user_embs_t = jnp.take(self.user_emb_t, u_idx, axis=1)          # [E, Bp]
        item_embs_t = jnp.take(self.item_emb_t, i_idx, axis=1)          # [E, Bp]
        item_contents_t = jnp.take(self.item_content_t, i_idx, axis=1)  # [C, Bp]
        return user_embs_t, item_embs_t, item_contents_t

    def forward(self, batch_u, batch_i, cold_loss_grads_t=None,
                meta_ID_emb_t=None, warm_or_cold="warm"):
        n = batch_u.shape[0]
        user_t, item_t, cont_t = self.get_embeddings_and_info(batch_u, batch_i)
        if warm_or_cold == "warm":
            return warm_yhat_t(user_t, item_t)[:n]
        elif warm_or_cold == "cold":
            if meta_ID_emb_t is None:
                meta_t, yhat_a = cold_a_yhat_t(cont_t, self.w_scaled,
                                               self.b_scaled, user_t)
                self.meta_ID_emb_t = meta_t          # transposed, padded
                return yhat_a[:n]
            else:
                # TODO(synk): torch.autograd.grad(cold_loss_a, meta_ID_emb) has
                # no in-kernel equivalent; caller supplies grads ([E, Bp]).
                return cold_b_yhat_t(user_t, meta_ID_emb_t,
                                     cold_loss_grads_t, self.cold_lr)[:n]
        else:
            raise ValueError(warm_or_cold)


# ---------------------------------------------------------------------------
# Demo / correctness check
# ---------------------------------------------------------------------------
if __name__ == "__main__":
    key = jax.random.PRNGKey(0)
    (k_ue, k_ie, k_ct, k_w, k_b,
     k_bu, k_bi, k_g, k_bu2, k_bi2) = jax.random.split(key, 10)

    n_users, n_items = 64, 80
    emb_size, content_dim = 32, 48
    cold_lr = 0.1

    user_emb = jax.random.normal(k_ue, (n_users, emb_size), jnp.float32)
    item_emb = jax.random.normal(k_ie, (n_items, emb_size), jnp.float32)
    item_content = jax.random.normal(k_ct, (n_items, content_dim), jnp.float32)
    bound = 1.0 / (content_dim ** 0.5)
    w = jax.random.uniform(k_w, (emb_size, content_dim), jnp.float32,
                           -bound, bound)
    b = jax.random.uniform(k_b, (emb_size,), jnp.float32, -bound, bound)

    model = MetaEmbeddingLearner(user_emb, item_emb, item_content,
                                 w, b, cold_lr)

    # References use the same bf16-quantized tables the kernels stream (the
    # remaining delta vs the f32 PyTorch module is ~1e-2 relative, an
    # intentional trade per the perf review).
    ue_q = user_emb.astype(jnp.bfloat16).astype(jnp.float32)
    ie_q = item_emb.astype(jnp.bfloat16).astype(jnp.float32)
    ct_q = item_content.astype(jnp.bfloat16).astype(jnp.float32)
    w_q = (w / 5.0).astype(jnp.bfloat16).astype(jnp.float32)
    b_q = b / 5.0

    def check(batch, k_u, k_i, k_lbl, tag):
        batch_u = jax.random.randint(k_u, (batch,), 0, n_users)
        batch_i = jax.random.randint(k_i, (batch,), 0, n_items)
        u = ue_q[batch_u]
        i = ie_q[batch_i]
        c = ct_q[batch_i]

        # --- warm path ---------------------------------------------------
        y_warm = jax.block_until_ready(
            model.forward(batch_u, batch_i, warm_or_cold="warm"))
        ref_warm = jnp.sum(u * i, axis=1)
        assert y_warm.shape == (batch,), tag
        assert jnp.allclose(y_warm, ref_warm, atol=1e-2, rtol=1e-2), tag

        # --- cold path, phase a -------------------------------------------
        y_a = jax.block_until_ready(
            model.forward(batch_u, batch_i, warm_or_cold="cold"))
        ref_meta = c @ w_q.T + b_q
        ref_a = jnp.sum(u * ref_meta, axis=1)
        assert jnp.allclose(y_a, ref_a, atol=1e-2, rtol=1e-2), tag
        meta_t = model.meta_ID_emb_t                       # [E, Bp] f32
        assert jnp.allclose(meta_t[:, :batch].T, ref_meta,
                            atol=1e-2, rtol=1e-2), tag

        # --- cold path, phase b -------------------------------------------
        # Gradient of a simple MSE loss w.r.t. meta (jax.grad = glue, stands
        # in for torch.autograd.grad), in the transposed layout.
        labels = jax.random.normal(k_lbl, (batch,), jnp.float32)
        bp = meta_t.shape[1]
        u_idx_p = jnp.pad(batch_u.astype(jnp.int32), (0, bp - batch))
        u_t_full = jnp.take(model.user_emb_t, u_idx_p,
                            axis=1).astype(jnp.float32)

        def cold_loss(m_t):
            yhat = jnp.sum(u_t_full[:, :batch] * m_t[:, :batch], axis=0)
            return jnp.mean((yhat - labels) ** 2)

        grads_t = jax.grad(cold_loss)(meta_t)
        y_b = jax.block_until_ready(
            model.forward(batch_u, batch_i, cold_loss_grads_t=grads_t,
                          meta_ID_emb_t=meta_t, warm_or_cold="cold"))
        ref_meta_new = meta_t[:, :batch].T - cold_lr * grads_t[:, :batch].T
        ref_b = jnp.sum(u * ref_meta_new, axis=1)
        assert jnp.allclose(y_b, ref_b, atol=1e-2, rtol=1e-2), tag

    # Small batch (single grid step) and a batch that exercises a multi-step
    # grid with a partial last block.
    check(8, k_bu, k_bi, k_g, "B=8")
    check(300, k_bu2, k_bi2, k_g, "B=300")

    print("KERNEL_OK")
</pallas_src>

<mosaic_0001>
module attributes {stable_mosaic.version = 11 : i64} {
  func.func @_warm_kernel(%arg0: i32, %arg1: memref<32x128xbf16, #tpu.memory_space<vmem>>, %arg2: memref<32x128xbf16, #tpu.memory_space<vmem>>, %arg3: memref<1x128xf32, #tpu.memory_space<vmem>>) attributes {dimension_semantics = [#tpu.dimension_semantics<parallel>], iteration_bounds = array<i64: 1>, scalar_prefetch = 0 : i64, scratch_operands = 0 : i64, tpu.core_type = #tpu.core_type<tc>, window_params = [{transform_indices = @transform_0, window_bounds = array<i64: 32, 128>}, {transform_indices = @transform_1, window_bounds = array<i64: 32, 128>}, {transform_indices = @transform_2, window_bounds = array<i64: 1, 128>}]} {
    %c0 = arith.constant 0 : index
    %c0_0 = arith.constant 0 : index
    %0 = vector.load %arg1[%c0, %c0_0] : memref<32x128xbf16, #tpu.memory_space<vmem>>, vector<32x128xbf16>
    %1 = arith.extf %0 : vector<32x128xbf16> to vector<32x128xf32>
    %c0_1 = arith.constant 0 : index
    %c0_2 = arith.constant 0 : index
    %2 = vector.load %arg2[%c0_1, %c0_2] : memref<32x128xbf16, #tpu.memory_space<vmem>>, vector<32x128xbf16>
    %3 = arith.extf %2 : vector<32x128xbf16> to vector<32x128xf32>
    %4 = arith.mulf %1, %3 : vector<32x128xf32>
    %cst = arith.constant dense<0.000000e+00> : vector<128xf32>
    %5 = vector.multi_reduction <add>, %4, %cst [0] : vector<32x128xf32> to vector<128xf32>
    %6 = vector.shape_cast %5 : vector<128xf32> to vector<1x128xf32>
    %c0_3 = arith.constant 0 : index
    %c0_4 = arith.constant 0 : index
    %7 = vector.load %arg3[%c0_3, %c0_4] : memref<1x128xf32, #tpu.memory_space<vmem>>, vector<1x128xf32>
    tpu.vector_store %arg3[%c0_3, %c0_4], %6 {strides = array<i32>} : memref<1x128xf32, #tpu.memory_space<vmem>>, vector<1x128xf32>,
    return
  }
  func.func @transform_0(%arg0: i32) -> (i32, i32) {
    %c0_i32 = arith.constant 0 : i32
    %c0_i32_0 = arith.constant 0 : i32
    return %c0_i32, %arg0 : i32, i32
  }
  func.func @transform_1(%arg0: i32) -> (i32, i32) {
    %c0_i32 = arith.constant 0 : i32
    %c0_i32_0 = arith.constant 0 : i32
    return %c0_i32, %arg0 : i32, i32
  }
  func.func @transform_2(%arg0: i32) -> (i32, i32) {
    %c0_i32 = arith.constant 0 : i32
    %c0_i32_0 = arith.constant 0 : i32
    return %c0_i32, %arg0 : i32, i32
  }
}

</mosaic_0001>

<llo_original>
// kernel: tpu_custom_call.1
$region0: #{tpu_custom_call.1}
  #allocation0 [shape = 'u32[]', space=smem, size = 0x4, offset = 0x4, fixed_abs, tag = 'smem constant byte address 0x4 - core index']
  #allocation1 [shape = 'u32[72,128]{1,0:T(1,128)}', space=vmem, size = 0x9000, scoped, tag = 'internal scratch']
  %s0 = inlined_call_operand.hbm [shape: bf16[32,128], index: 0, kind: input, shape index: {}]
  %s1 = inlined_call_operand.hbm [shape: bf16[32,128], index: 1, kind: input, shape index: {}]
  %s2 = inlined_call_operand.hbm [shape: f32[1,128], index: 2, kind: output, shape index: {}]
  %s3 = sld [smem:[#allocation0]]
  $region26: #{tpu_custom_call.1} parent=0
    _
  %s5 = ssub.s32 1, %s3
  %s6 = scalar_select 0, %s5, %s3
  $region1: #{tpu_custom_call.1} parent=0
    #allocation2 [shape = 'u8[8192]{0}', space=vmem, size = 0x2000, scoped, tag = 'input window, operand 0, single buffered']
    #allocation3 [shape = 's32[1]{0}', space=sflag, size = 0x4, scoped, tag = 'scoped memory for tpu_custom_call.1']
    #allocation4 [shape = 's32[1]{0}', space=sflag, size = 0x4, scoped, tag = 'scoped memory for tpu_custom_call.1']
    #allocation5 [shape = 'u8[8192]{0}', space=vmem, size = 0x2000, scoped, tag = 'input window, operand 1, single buffered']
    #allocation6 [shape = 's32[1]{0}', space=sflag, size = 0x4, scoped, tag = 'scoped memory for tpu_custom_call.1']
    #allocation7 [shape = 'u8[512]{0}', space=vmem, size = 0x400, scoped, tag = 'output window, operand 0, single buffered']
    %7 = vsyncpa [#allocation3], 0
    %8 = vsyncpa [#allocation6], 0
    %9 = vsyncpa [#allocation4], 0
    // Predicated region
    $region2: #{tpu_custom_call.1} parent=1 // pred_check
      _
    $region3: #{tpu_custom_call.1} parent=1 // pred_check_branch
      %11 = sbr.rel (0) target = $region5
    $region4: #{tpu_custom_call.1} parent=1 // pred_region
      %13 = vsyncadd [#allocation3], 0
      %s14 = sshll.u32 %s0, 4
      %s15 = int_to_ptr.hbm [resolvable:$true] %s14
      %s16 = sshll.u32 [#allocation2], 4
      %s17 = int_to_ptr.vmem [resolvable:$true] %s16
      %22 = dma.hbm_to_vmem [thread:$0]  %s15, 256, %s17, [#allocation3], 64, 64, 4
    $region5: #{tpu_custom_call.1} parent=1 // pred_fallthru
      _
    // Predicated region
    $region6: #{tpu_custom_call.1} parent=1 // pred_check
      _
    $region7: #{tpu_custom_call.1} parent=1 // pred_check_branch
      %24 = sbr.rel (0) target = $region9
    $region8: #{tpu_custom_call.1} parent=1 // pred_region
      %26 = vsyncadd [#allocation6], 0
      %s27 = sshll.u32 %s1, 4
      %s28 = int_to_ptr.hbm [resolvable:$true] %s27
      %s29 = sshll.u32 [#allocation5], 4
      %s30 = int_to_ptr.vmem [resolvable:$true] %s29
      %35 = dma.hbm_to_vmem [thread:$0]  %s28, 256, %s30, [#allocation6], 64, 64, 4
    $region9: #{tpu_custom_call.1} parent=1 // pred_fallthru
      _
    // Predicated region
    $region10: #{tpu_custom_call.1} parent=1 // pred_check
      _
    $region11: #{tpu_custom_call.1} parent=1 // pred_check_branch
      %37 = sbr.rel (0) target = $region13
    $region12: #{tpu_custom_call.1} parent=1 // pred_region
      %39 = dma.done [#allocation3], 256
    $region13: #{tpu_custom_call.1} parent=1 // pred_fallthru
      _
    // Predicated region
    $region14: #{tpu_custom_call.1} parent=1 // pred_check
      _
    $region15: #{tpu_custom_call.1} parent=1 // pred_check_branch
      %41 = sbr.rel (0) target = $region17
    $region16: #{tpu_custom_call.1} parent=1 // pred_region
      %43 = dma.done [#allocation6], 256
    $region17: #{tpu_custom_call.1} parent=1 // pred_fallthru
      _
    %v44 = vld [vmem:[#allocation2] sm:$0xf]
    %v45 = vld [vmem:[#allocation2 + $0x4] sm:$0xf]
    %v46 = vld [vmem:[#allocation2 + $0x8] sm:$0xf]
    %v47 = vld [vmem:[#allocation2 + $0xc] sm:$0xf]
    %v48 = vunpack.c.l.bf16 %v44
    %v49 = vunpack.c.l.bf16 %v45
    %v50 = vunpack.c.l.bf16 %v46
    %v51 = vunpack.c.l.bf16 %v47
    %v52 = vld [vmem:[#allocation5] sm:$0xf]
    %v53 = vld [vmem:[#allocation5 + $0x4] sm:$0xf]
    %v54 = vld [vmem:[#allocation5 + $0x8] sm:$0xf]
    %v55 = vld [vmem:[#allocation5 + $0xc] sm:$0xf]
    %v56 = vunpack.c.l.bf16 %v52
    %v57 = vunpack.c.l.bf16 %v53
    %v58 = vunpack.c.l.bf16 %v54
    %v59 = vunpack.c.l.bf16 %v55
    %v60 = vmul.f32 %v48, %v56
    %v61 = vmul.f32 %v49, %v57
    %v62 = vmul.f32 %v50, %v58
    %v63 = vmul.f32 %v51, %v59
    %v64 = vadd.f32 %v60, %v61
    %v65 = vadd.f32 %v64, %v62
    %v66 = vadd.f32 %v65, %v63
    %v67 = vrot.slane %v66, 4
    %v68 = vadd.f32 %v66, %v67
    %v69 = vrot.slane %v68, 2
    %v70 = vadd.f32 %v68, %v69
    %v71 = vrot.slane %v70, 1
    %v72 = vadd.f32 %v70, %v71
    %73 = vst [vmem:[#allocation7] sm:$0x1] %v72
    // Predicated region
    $region18: #{tpu_custom_call.1} parent=1 // pred_check
      _
    $region19: #{tpu_custom_call.1} parent=1 // pred_check_branch
      %75 = sbr.rel (0) target = $region21
    $region20: #{tpu_custom_call.1} parent=1 // pred_region
      %77 = vsyncadd [#allocation4], 0
      %s79 = sshll.u32 [#allocation7], 4
      %s80 = int_to_ptr.vmem [resolvable:$true] %s79
      %s81 = sshll.u32 %s2, 4
      %s82 = int_to_ptr.hbm [resolvable:$true] %s81
      %84 = dma.vmem_to_hbm [thread:$0]  %s80, 16, %s82, [#allocation4]
    $region21: #{tpu_custom_call.1} parent=1 // pred_fallthru
      _
    // Predicated region
    $region22: #{tpu_custom_call.1} parent=1 // pred_check
      _
    $region23: #{tpu_custom_call.1} parent=1 // pred_check_branch
      %86 = sbr.rel (0) target = $region25
    $region24: #{tpu_custom_call.1} parent=1 // pred_region
      %88 = dma.done [#allocation4], 16
    $region25: #{tpu_custom_call.1} parent=1 // pred_fallthru
      _
    %89 = vsyncpa [#allocation3], 1
    %90 = vsyncpa [#allocation6], 1
    %91 = vsyncpa [#allocation4], 1

</llo_original>
